<compile_context>
chip_gen: v6e
topology: v6e:2x2x1
jax: 0.10.0
libtpu: 0.0.40
codegen_flags: <defaults>
</compile_context>

<pallas_src>
import math

import jax
import jax.numpy as jnp
from jax.experimental import pallas as pl
from jax.experimental.pallas import tpu as pltpu

LORA_DIMS = (8, 16, 32, 48, 64, 96, 128)
KAPPA = 0.025
MOMENTUM = 0.999


def _lora_moe_kernel(h_ref, b_ref, y_ref):
    """One output-C tile: K expert B-projections + streaming logsumexp.

    h_ref: [Bp, K*Dmax]   gelu(x_mean @ A_all^T), tiny resident input
    b_ref: [K, Dmax, TC]  LoRA-B weights for this output-C tile (streamed)
    y_ref: [Bp, TC]       output tile
    """
    num_experts, d_max, _ = b_ref.shape
    h = h_ref[...]                        # storage dtype; matmuls accumulate in f32

    m = None
    s = None
    for e in range(num_experts):          # K is small & static -> unrolled
        h_e = h[:, e * d_max:(e + 1) * d_max]          # lane-aligned static slice
        o = jax.lax.dot_general(h_e, b_ref[e], (((1,), (0,)), ((), ())),
                                preferred_element_type=jnp.float32)   # [Bp, TC] f32
        if e == 0:
            m = o
            s = jnp.ones_like(o)          # exp(o - m) == 1 for the first expert
        else:
            m_new = jnp.maximum(m, o)
            s = s * jnp.exp(m - m_new) + jnp.exp(o - m_new)
            m = m_new
    # NOTE: torch's `sum_exp.clamp_(min=eps)` is dead code here: the max term
    # always contributes exp(0)=1, so s >= 1 and the clamp can never fire.
    y_ref[...] = (m + jnp.log(s)).astype(y_ref.dtype)


def _sinkhorn_routing(x_mean, prototypes, num_iters=3, eps=1e-6):
    """Tiny [B,K] routing (plain JAX, f32). Gates do not affect y (dense dispatch)."""
    xn = x_mean / jnp.maximum(
        jnp.linalg.norm(x_mean, axis=-1, keepdims=True), 1e-12)
    pn = prototypes / jnp.maximum(
        jnp.linalg.norm(prototypes, axis=-1, keepdims=True), 1e-12)
    sim = pn @ xn.T                       # [K, B]
    L = jnp.exp(sim / KAPPA)
    for _ in range(num_iters):
        L = L / (L.sum(axis=1, keepdims=True) + eps)
        L = L / (L.sum(axis=0, keepdims=True) + eps)
    return L.T                            # [B, K]


def _round_up(v, m):
    return ((v + m - 1) // m) * m


def _pick_c_tile(cp):
    """Largest lane-dense output tile that still leaves >=2 grid steps (so both
    v7x TensorCores get work under 'parallel'); falls back to the largest
    divisor (single step) at small C."""
    for t in (1024, 512, 384, 256, 128):
        if cp % t == 0 and cp // t >= 2:
            return t
    for t in (1024, 512, 384, 256, 128):
        if cp % t == 0:
            return t
    return cp


def lora_moe_forward(x, a_stack, b_stack, prototypes, weight_dtype=None):
    """LoRA-MoE forward.

    x:            [B, N, C]
    a_stack:      [K, Dmax, C]   zero-padded LoRA-A weights (module layout, stacked)
    b_stack:      [K, C, Dmax]   zero-padded LoRA-B weights (module layout, stacked)
    prototypes:   [K, C]
    weight_dtype: optional storage/compute dtype for the expert weights and h
                  (e.g. jnp.bfloat16 to halve the bandwidth-bound HBM traffic).
    Returns (y [B,1,C], loss=0, new_prototypes [K,C]).
    """
    B, N, C = x.shape
    K, Dmax, _ = a_stack.shape
    w_dtype = jnp.dtype(weight_dtype) if weight_dtype is not None else jnp.dtype(x.dtype)

    x_mean = jnp.mean(x, axis=1)                       # [B, C]

    # Routing + prototype EMA (stateful side effect in torch; returned here).
    # Kept in f32: exp(sim/0.025) underflows easily in low precision.
    x32 = x_mean.astype(jnp.float32)
    gates = _sinkhorn_routing(x32, prototypes.astype(jnp.float32))    # [B, K] > 0
    gsm = jax.nn.softmax(gates, axis=0)
    new_prototypes = (MOMENTUM * prototypes.astype(jnp.float32)
                      + (1.0 - MOMENTUM) * (gsm.T @ x32)).astype(prototypes.dtype)

    # ---- hoisted first projection: done ONCE in XLA, not per output-C tile -------
    a_all = a_stack.reshape(K * Dmax, C).astype(w_dtype)              # [K*Dmax, C]
    h = jax.lax.dot_general(x_mean.astype(w_dtype), a_all,
                            (((1,), (1,)), ((), ())),
                            preferred_element_type=jnp.float32)       # [B, K*Dmax]
    h = jax.nn.gelu(h, approximate=False)              # exact erf GELU (== F.gelu)
    h = h.astype(w_dtype)

    # ---- lane/sublane-dense padded layouts (wrapper-side plumbing) ---------------
    Bp = _round_up(B, 8)
    Cp = _round_up(C, 128)
    TC = _pick_c_tile(Cp)

    h_p = jnp.pad(h, ((0, Bp - B), (0, 0)))                           # [Bp, K*Dmax]
    # B weights stored rank-on-sublanes / C-on-lanes: [K, Dmax, Cp]
    b_kdc = jnp.pad(jnp.swapaxes(b_stack, 1, 2).astype(w_dtype),
                    ((0, 0), (0, 0), (0, Cp - C)))

    # Accurate per-buffer VMEM budget: double-buffered h / B-tile / out-tile + slack,
    # clamped under v7x's 64 MiB per-TC VMEM (can be raised on 128 MiB v5e/v6e).
    w_isz = w_dtype.itemsize
    o_isz = jnp.dtype(x.dtype).itemsize
    need = (2 * Bp * K * Dmax * w_isz          # h (resident, default double-buffered)
            + 2 * K * Dmax * TC * w_isz        # streamed B tile
            + 2 * Bp * TC * o_isz              # output tile
            + (4 << 20))                       # slack
    vmem_limit = int(min(max(need, 16 << 20), 48 << 20))

    y_padded = pl.pallas_call(
        _lora_moe_kernel,
        out_shape=jax.ShapeDtypeStruct((Bp, Cp), x.dtype),
        grid_spec=pltpu.PrefetchScalarGridSpec(
            num_scalar_prefetch=0,
            grid=(Cp // TC,),
            in_specs=[
                pl.BlockSpec((Bp, K * Dmax), lambda c: (0, 0)),      # h (resident)
                pl.BlockSpec((K, Dmax, TC), lambda c: (0, 0, c)),    # B tile (streamed)
            ],
            out_specs=pl.BlockSpec((Bp, TC), lambda c: (0, c)),
        ),
        compiler_params=pltpu.CompilerParams(
            dimension_semantics=("parallel",),      # v7x: both TCs take C-tiles
            vmem_limit_bytes=vmem_limit,
        ),
    )(h_p, b_kdc)

    y = y_padded[:B, :C][:, None, :]               # [B, 1, C]  (y.unsqueeze(1))
    loss = jnp.float32(0.0)
    return y, loss, new_prototypes


def _reference(x, a_stack, b_stack):
    """Pure-JAX reference of the dense-MoE logsumexp combine."""
    x_mean = jnp.mean(x, axis=1)
    h = jnp.einsum('bc,kdc->kbd', x_mean, a_stack)
    h = jax.nn.gelu(h, approximate=False)
    o = jnp.einsum('kbd,kcd->kbc', h, b_stack)
    return jax.scipy.special.logsumexp(o, axis=0)[:, None, :]


if __name__ == "__main__":
    B, N, C = 2, 8, 32
    K = len(LORA_DIMS)
    Dmax = max(LORA_DIMS)

    key = jax.random.PRNGKey(0)
    kx, kp, *kw = jax.random.split(key, 2 + 2 * K)

    x = jax.random.normal(kx, (B, N, C), dtype=jnp.float32)
    prototypes = jax.random.normal(kp, (K, C), dtype=jnp.float32)

    a_stack = jnp.zeros((K, Dmax, C), jnp.float32)
    b_stack = jnp.zeros((K, C, Dmax), jnp.float32)
    bound_a = 1.0 / math.sqrt(C)  # kaiming_uniform(a=sqrt(5)) on [d, C]
    for i, d in enumerate(LORA_DIMS):
        a_w = jax.random.uniform(kw[2 * i], (d, C), jnp.float32,
                                 -bound_a, bound_a)
        # NOTE: the module zero-inits LoRA-B (output would be the constant log(K));
        # small random values keep identical compute semantics but non-trivial work.
        b_w = jax.random.uniform(kw[2 * i + 1], (C, d), jnp.float32, -0.1, 0.1)
        a_stack = a_stack.at[i, :d, :].set(a_w)
        b_stack = b_stack.at[i, :, :d].set(b_w)

    fwd = jax.jit(lora_moe_forward, static_argnames=("weight_dtype",))
    y_ref = _reference(x, a_stack, b_stack)

    # f32 weights: exact path, tight tolerance.
    y, loss, new_protos = fwd(x, a_stack, b_stack, prototypes)
    jax.block_until_ready((y, loss, new_protos))
    assert y.shape == (B, 1, C)
    assert new_protos.shape == (K, C)
    assert jnp.allclose(y, y_ref, atol=1e-5, rtol=1e-5), (
        float(jnp.max(jnp.abs(y - y_ref))))

    # bf16 weights: halves weight HBM bytes on this bandwidth-bound kernel;
    # compared against the f32 reference with relaxed tolerance.
    y16, _, _ = fwd(x, a_stack, b_stack, prototypes, weight_dtype=jnp.bfloat16)
    jax.block_until_ready(y16)
    assert jnp.allclose(y16.astype(jnp.float32), y_ref, atol=1e-1, rtol=1e-1), (
        float(jnp.max(jnp.abs(y16.astype(jnp.float32) - y_ref))))

    print("KERNEL_OK")
</pallas_src>

<mosaic_0001>
module attributes {stable_mosaic.version = 11 : i64} {
  func.func @_lora_moe_kernel(%arg0: i32, %arg1: memref<8x896xf32, #tpu.memory_space<vmem>>, %arg2: memref<7x128x128xf32, #tpu.memory_space<vmem>>, %arg3: memref<8x128xf32, #tpu.memory_space<vmem>>) attributes {dimension_semantics = [#tpu.dimension_semantics<parallel>], iteration_bounds = array<i64: 1>, scalar_prefetch = 0 : i64, scratch_operands = 0 : i64, tpu.core_type = #tpu.core_type<tc>, window_params = [{pipeline_mode = #tpu.pipeline_mode<synchronous>, transform_indices = @transform_0, window_bounds = array<i64: 8, 896>}, {transform_indices = @transform_1, window_bounds = array<i64: 7, 128, 128>}, {transform_indices = @transform_2, window_bounds = array<i64: 8, 128>}]} {
    %c0 = arith.constant 0 : index
    %c0_0 = arith.constant 0 : index
    %0 = vector.load %arg1[%c0, %c0_0] : memref<8x896xf32, #tpu.memory_space<vmem>>, vector<8x896xf32>
    %1 = vector.extract_strided_slice %0 {offsets = [0, 0], sizes = [8, 128], strides = [1, 1]} : vector<8x896xf32> to vector<8x128xf32>
    %c0_1 = arith.constant 0 : index
    %c0_2 = arith.constant 0 : index
    %c0_3 = arith.constant 0 : index
    %2 = vector.load %arg2[%c0_1, %c0_2, %c0_3] : memref<7x128x128xf32, #tpu.memory_space<vmem>>, vector<1x128x128xf32>
    %3 = vector.shape_cast %2 : vector<1x128x128xf32> to vector<128x128xf32>
    %cst = arith.constant dense<0.000000e+00> : vector<8x128xf32>
    %4 = tpu.matmul %1, %3, %cst {dimension_numbers = #tpu.dot_dimension_numbers<[1], [0], [0], [1], [0, 0, 1, 1], [], []>} : vector<8x128xf32>, vector<128x128xf32>, vector<8x128xf32> -> vector<8x128xf32>
    %cst_4 = arith.constant 1.000000e+00 : f32
    %5 = vector.broadcast %cst_4 : f32 to vector<8x128xf32>
    %6 = vector.extract_strided_slice %0 {offsets = [0, 128], sizes = [8, 128], strides = [1, 1]} : vector<8x896xf32> to vector<8x128xf32>
    %c1 = arith.constant 1 : index
    %c0_5 = arith.constant 0 : index
    %c0_6 = arith.constant 0 : index
    %7 = vector.load %arg2[%c1, %c0_5, %c0_6] : memref<7x128x128xf32, #tpu.memory_space<vmem>>, vector<1x128x128xf32>
    %8 = vector.shape_cast %7 : vector<1x128x128xf32> to vector<128x128xf32>
    %cst_7 = arith.constant dense<0.000000e+00> : vector<8x128xf32>
    %9 = tpu.matmul %6, %8, %cst_7 {dimension_numbers = #tpu.dot_dimension_numbers<[1], [0], [0], [1], [0, 0, 1, 1], [], []>} : vector<8x128xf32>, vector<128x128xf32>, vector<8x128xf32> -> vector<8x128xf32>
    %10 = arith.maximumf %4, %9 : vector<8x128xf32>
    %11 = arith.subf %4, %10 : vector<8x128xf32>
    %12 = math.exp %11 : vector<8x128xf32>
    %13 = arith.mulf %5, %12 : vector<8x128xf32>
    %14 = arith.subf %9, %10 : vector<8x128xf32>
    %15 = math.exp %14 : vector<8x128xf32>
    %16 = arith.addf %13, %15 : vector<8x128xf32>
    %17 = vector.extract_strided_slice %0 {offsets = [0, 256], sizes = [8, 128], strides = [1, 1]} : vector<8x896xf32> to vector<8x128xf32>
    %c2 = arith.constant 2 : index
    %c0_8 = arith.constant 0 : index
    %c0_9 = arith.constant 0 : index
    %18 = vector.load %arg2[%c2, %c0_8, %c0_9] : memref<7x128x128xf32, #tpu.memory_space<vmem>>, vector<1x128x128xf32>
    %19 = vector.shape_cast %18 : vector<1x128x128xf32> to vector<128x128xf32>
    %cst_10 = arith.constant dense<0.000000e+00> : vector<8x128xf32>
    %20 = tpu.matmul %17, %19, %cst_10 {dimension_numbers = #tpu.dot_dimension_numbers<[1], [0], [0], [1], [0, 0, 1, 1], [], []>} : vector<8x128xf32>, vector<128x128xf32>, vector<8x128xf32> -> vector<8x128xf32>
    %21 = arith.maximumf %10, %20 : vector<8x128xf32>
    %22 = arith.subf %10, %21 : vector<8x128xf32>
    %23 = math.exp %22 : vector<8x128xf32>
    %24 = arith.mulf %16, %23 : vector<8x128xf32>
    %25 = arith.subf %20, %21 : vector<8x128xf32>
    %26 = math.exp %25 : vector<8x128xf32>
    %27 = arith.addf %24, %26 : vector<8x128xf32>
    %28 = vector.extract_strided_slice %0 {offsets = [0, 384], sizes = [8, 128], strides = [1, 1]} : vector<8x896xf32> to vector<8x128xf32>
    %c3 = arith.constant 3 : index
    %c0_11 = arith.constant 0 : index
    %c0_12 = arith.constant 0 : index
    %29 = vector.load %arg2[%c3, %c0_11, %c0_12] : memref<7x128x128xf32, #tpu.memory_space<vmem>>, vector<1x128x128xf32>
    %30 = vector.shape_cast %29 : vector<1x128x128xf32> to vector<128x128xf32>
    %cst_13 = arith.constant dense<0.000000e+00> : vector<8x128xf32>
    %31 = tpu.matmul %28, %30, %cst_13 {dimension_numbers = #tpu.dot_dimension_numbers<[1], [0], [0], [1], [0, 0, 1, 1], [], []>} : vector<8x128xf32>, vector<128x128xf32>, vector<8x128xf32> -> vector<8x128xf32>
    %32 = arith.maximumf %21, %31 : vector<8x128xf32>
    %33 = arith.subf %21, %32 : vector<8x128xf32>
    %34 = math.exp %33 : vector<8x128xf32>
    %35 = arith.mulf %27, %34 : vector<8x128xf32>
    %36 = arith.subf %31, %32 : vector<8x128xf32>
    %37 = math.exp %36 : vector<8x128xf32>
    %38 = arith.addf %35, %37 : vector<8x128xf32>
    %39 = vector.extract_strided_slice %0 {offsets = [0, 512], sizes = [8, 128], strides = [1, 1]} : vector<8x896xf32> to vector<8x128xf32>
    %c4 = arith.constant 4 : index
    %c0_14 = arith.constant 0 : index
    %c0_15 = arith.constant 0 : index
    %40 = vector.load %arg2[%c4, %c0_14, %c0_15] : memref<7x128x128xf32, #tpu.memory_space<vmem>>, vector<1x128x128xf32>
    %41 = vector.shape_cast %40 : vector<1x128x128xf32> to vector<128x128xf32>
    %cst_16 = arith.constant dense<0.000000e+00> : vector<8x128xf32>
    %42 = tpu.matmul %39, %41, %cst_16 {dimension_numbers = #tpu.dot_dimension_numbers<[1], [0], [0], [1], [0, 0, 1, 1], [], []>} : vector<8x128xf32>, vector<128x128xf32>, vector<8x128xf32> -> vector<8x128xf32>
    %43 = arith.maximumf %32, %42 : vector<8x128xf32>
    %44 = arith.subf %32, %43 : vector<8x128xf32>
    %45 = math.exp %44 : vector<8x128xf32>
    %46 = arith.mulf %38, %45 : vector<8x128xf32>
    %47 = arith.subf %42, %43 : vector<8x128xf32>
    %48 = math.exp %47 : vector<8x128xf32>
    %49 = arith.addf %46, %48 : vector<8x128xf32>
    %50 = vector.extract_strided_slice %0 {offsets = [0, 640], sizes = [8, 128], strides = [1, 1]} : vector<8x896xf32> to vector<8x128xf32>
    %c5 = arith.constant 5 : index
    %c0_17 = arith.constant 0 : index
    %c0_18 = arith.constant 0 : index
    %51 = vector.load %arg2[%c5, %c0_17, %c0_18] : memref<7x128x128xf32, #tpu.memory_space<vmem>>, vector<1x128x128xf32>
    %52 = vector.shape_cast %51 : vector<1x128x128xf32> to vector<128x128xf32>
    %cst_19 = arith.constant dense<0.000000e+00> : vector<8x128xf32>
    %53 = tpu.matmul %50, %52, %cst_19 {dimension_numbers = #tpu.dot_dimension_numbers<[1], [0], [0], [1], [0, 0, 1, 1], [], []>} : vector<8x128xf32>, vector<128x128xf32>, vector<8x128xf32> -> vector<8x128xf32>
    %54 = arith.maximumf %43, %53 : vector<8x128xf32>
    %55 = arith.subf %43, %54 : vector<8x128xf32>
    %56 = math.exp %55 : vector<8x128xf32>
    %57 = arith.mulf %49, %56 : vector<8x128xf32>
    %58 = arith.subf %53, %54 : vector<8x128xf32>
    %59 = math.exp %58 : vector<8x128xf32>
    %60 = arith.addf %57, %59 : vector<8x128xf32>
    %61 = vector.extract_strided_slice %0 {offsets = [0, 768], sizes = [8, 128], strides = [1, 1]} : vector<8x896xf32> to vector<8x128xf32>
    %c6 = arith.constant 6 : index
    %c0_20 = arith.constant 0 : index
    %c0_21 = arith.constant 0 : index
    %62 = vector.load %arg2[%c6, %c0_20, %c0_21] : memref<7x128x128xf32, #tpu.memory_space<vmem>>, vector<1x128x128xf32>
    %63 = vector.shape_cast %62 : vector<1x128x128xf32> to vector<128x128xf32>
    %cst_22 = arith.constant dense<0.000000e+00> : vector<8x128xf32>
    %64 = tpu.matmul %61, %63, %cst_22 {dimension_numbers = #tpu.dot_dimension_numbers<[1], [0], [0], [1], [0, 0, 1, 1], [], []>} : vector<8x128xf32>, vector<128x128xf32>, vector<8x128xf32> -> vector<8x128xf32>
    %65 = arith.maximumf %54, %64 : vector<8x128xf32>
    %66 = arith.subf %54, %65 : vector<8x128xf32>
    %67 = math.exp %66 : vector<8x128xf32>
    %68 = arith.mulf %60, %67 : vector<8x128xf32>
    %69 = arith.subf %64, %65 : vector<8x128xf32>
    %70 = math.exp %69 : vector<8x128xf32>
    %71 = arith.addf %68, %70 : vector<8x128xf32>
    %72 = math.log %71 : vector<8x128xf32>
    %73 = arith.addf %65, %72 : vector<8x128xf32>
    %c0_23 = arith.constant 0 : index
    %c0_24 = arith.constant 0 : index
    %74 = vector.load %arg3[%c0_23, %c0_24] : memref<8x128xf32, #tpu.memory_space<vmem>>, vector<8x128xf32>
    tpu.vector_store %arg3[%c0_23, %c0_24], %73 {strides = array<i32>} : memref<8x128xf32, #tpu.memory_space<vmem>>, vector<8x128xf32>,
    return
  }
  func.func @transform_0(%arg0: i32) -> (i32, i32) {
    %c0_i32 = arith.constant 0 : i32
    %c0_i32_0 = arith.constant 0 : i32
    %c0_i32_1 = arith.constant 0 : i32
    return %c0_i32, %c0_i32_0 : i32, i32
  }
  func.func @transform_1(%arg0: i32) -> (i32, i32, i32) {
    %c0_i32 = arith.constant 0 : i32
    %c0_i32_0 = arith.constant 0 : i32
    %c0_i32_1 = arith.constant 0 : i32
    return %c0_i32, %c0_i32_0, %arg0 : i32, i32, i32
  }
  func.func @transform_2(%arg0: i32) -> (i32, i32) {
    %c0_i32 = arith.constant 0 : i32
    %c0_i32_0 = arith.constant 0 : i32
    return %c0_i32, %arg0 : i32, i32
  }
}

</mosaic_0001>

<llo_original>
// kernel: lora_moe_forward.1
$region0: #{lora_moe_forward.1}
  #allocation0 [shape = 'u32[]', space=smem, size = 0x4, offset = 0x4, fixed_abs, tag = 'smem constant byte address 0x4 - core index']
  #allocation1 [shape = 'u32[144,128]{1,0:T(1,128)}', space=vmem, size = 0x12000, scoped, tag = 'internal scratch']
  %s0 = inlined_call_operand.vmem [shape: f32[8,896], index: 0, kind: input, shape index: {}]
  %s1 = inlined_call_operand.vmem [shape: f32[7,128,128], index: 1, kind: input, shape index: {}]
  %s2 = inlined_call_operand.vmem [shape: f32[8,128], index: 2, kind: output, shape index: {}]
  %s3 = sld [smem:[#allocation0]]
  $region18: #{lora_moe_forward.1} parent=0
    _
  %s5 = ssub.s32 1, %s3
  %s6 = scalar_select 0, %s5, %s3
  // Predicated region
  $region2: #{lora_moe_forward.1} parent=0 // pred_check
    _
  $region3: #{lora_moe_forward.1} parent=0 // pred_check_branch
    %8 = sbr.rel (0) target = $region5
  $region4: #{lora_moe_forward.1} parent=0 // pred_region
    _
  $region5: #{lora_moe_forward.1} parent=0 // pred_fallthru
    _
  // Predicated region
  $region6: #{lora_moe_forward.1} parent=0 // pred_check
    _
  $region7: #{lora_moe_forward.1} parent=0 // pred_check_branch
    %10 = sbr.rel (0) target = $region9
  $region8: #{lora_moe_forward.1} parent=0 // pred_region
    _
  $region9: #{lora_moe_forward.1} parent=0 // pred_fallthru
    _
  %v11 = vld [vmem:[%s0] sm:$0xff]
  %v12 = vld [vmem:[%s0 + $0x8] sm:$0xff]
  %v13 = vld [vmem:[%s0 + $0x10] sm:$0xff]
  %v14 = vld [vmem:[%s0 + $0x18] sm:$0xff]
  %v15 = vld [vmem:[%s0 + $0x20] sm:$0xff]
  %v16 = vld [vmem:[%s0 + $0x28] sm:$0xff]
  %v17 = vld [vmem:[%s0 + $0x30] sm:$0xff]
  %v18 = vld [vmem:[%s1] sm:$0xff]
  %v19 = vld [vmem:[%s1 + $0x8] sm:$0xff]
  %v20 = vld [vmem:[%s1 + $0x10] sm:$0xff]
  %v21 = vld [vmem:[%s1 + $0x18] sm:$0xff]
  %v22 = vld [vmem:[%s1 + $0x20] sm:$0xff]
  %v23 = vld [vmem:[%s1 + $0x28] sm:$0xff]
  %v24 = vld [vmem:[%s1 + $0x30] sm:$0xff]
  %v25 = vld [vmem:[%s1 + $0x38] sm:$0xff]
  %v26 = vld [vmem:[%s1 + $0x40] sm:$0xff]
  %v27 = vld [vmem:[%s1 + $0x48] sm:$0xff]
  %v28 = vld [vmem:[%s1 + $0x50] sm:$0xff]
  %v29 = vld [vmem:[%s1 + $0x58] sm:$0xff]
  %v30 = vld [vmem:[%s1 + $0x60] sm:$0xff]
  %v31 = vld [vmem:[%s1 + $0x68] sm:$0xff]
  %v32 = vld [vmem:[%s1 + $0x70] sm:$0xff]
  %v33 = vld [vmem:[%s1 + $0x78] sm:$0xff]
  %34 = vmatprep.subr.mxu0 0.0
  %35 = vmatpush1.msra.mxu0 %v33
  %36 = vmatprep.subr.mxu0 0.0
  %37 = vmatpush1.msra.mxu0 %v32
  %38 = vmatprep.subr.mxu0 0.0
  %39 = vmatpush1.msra.mxu0 %v31
  %40 = vmatprep.subr.mxu0 0.0
  %41 = vmatpush1.msra.mxu0 %v30
  %42 = vmatprep.subr.mxu0 0.0
  %43 = vmatpush1.msra.mxu0 %v29
  %44 = vmatprep.subr.mxu0 0.0
  %45 = vmatpush1.msra.mxu0 %v28
  %46 = vmatprep.subr.mxu0 0.0
  %47 = vmatpush1.msra.mxu0 %v27
  %48 = vmatprep.subr.mxu0 0.0
  %49 = vmatpush1.msra.mxu0 %v26
  %50 = vmatprep.subr.mxu0 0.0
  %51 = vmatpush1.msra.mxu0 %v25
  %52 = vmatprep.subr.mxu0 0.0
  %53 = vmatpush1.msra.mxu0 %v24
  %54 = vmatprep.subr.mxu0 0.0
  %55 = vmatpush1.msra.mxu0 %v23
  %56 = vmatprep.subr.mxu0 0.0
  %57 = vmatpush1.msra.mxu0 %v22
  %58 = vmatprep.subr.mxu0 0.0
  %59 = vmatpush1.msra.mxu0 %v21
  %60 = vmatprep.subr.mxu0 0.0
  %61 = vmatpush1.msra.mxu0 %v20
  %62 = vmatprep.subr.mxu0 0.0
  %63 = vmatpush1.msra.mxu0 %v19
  %64 = vmatprep.subr.mxu0 0.0
  %65 = vmatpush1.msra.mxu0 %v18
  %66 = vmatprep.subr.mxu0 0.0
  %67 = vmatpush2.msra.mxu0 0.0
  %68 = vmatprep.subr.mxu0 0.0
  %69 = vmatpush2.msra.mxu0 0.0
  %70 = vmatprep.subr.mxu0 0.0
  %71 = vmatpush2.msra.mxu0 0.0
  %72 = vmatprep.subr.mxu0 0.0
  %73 = vmatpush2.msra.mxu0 0.0
  %74 = vmatprep.subr.mxu0 0.0
  %75 = vmatpush2.msra.mxu0 0.0
  %76 = vmatprep.subr.mxu0 0.0
  %77 = vmatpush2.msra.mxu0 0.0
  %78 = vmatprep.subr.mxu0 0.0
  %79 = vmatpush2.msra.mxu0 0.0
  %80 = vmatprep.subr.mxu0 0.0
  %81 = vmatpush2.msra.mxu0 0.0
  %82 = vmatprep.subr.mxu0 0.0
  %83 = vmatpush2.msra.mxu0 0.0
  %84 = vmatprep.subr.mxu0 0.0
  %85 = vmatpush2.msra.mxu0 0.0
  %86 = vmatprep.subr.mxu0 0.0
  %87 = vmatpush2.msra.mxu0 0.0
  %88 = vmatprep.subr.mxu0 0.0
  %89 = vmatpush2.msra.mxu0 0.0
  %90 = vmatprep.subr.mxu0 0.0
  %91 = vmatpush2.msra.mxu0 0.0
  %92 = vmatprep.subr.mxu0 0.0
  %93 = vmatpush2.msra.mxu0 0.0
  %94 = vmatprep.subr.mxu0 0.0
  %95 = vmatpush2.msra.mxu0 0.0
  %96 = vmatprep.subr.mxu0 0.0
  %97 = vmatpush2.msra.mxu0 0.0
  %98 = vmatprep.mubr.f32.mxu0 0.0
  %99 = vmatmul.mubr.f32.gmra.mxu0 %v11
  %v100 = vpop.f32.mrf.mxu0
  %v101 = vadd.f32 0.0, %v100
  %v102 = vpop.f32.mrf.mxu0
  %103 = vdwg.mxu0
  %s104 = scalar_lea.vmem %s1, 128
  %v105 = vld [vmem:[%s104] sm:$0xff]
  %v106 = vld [vmem:[%s104 + $0x8] sm:$0xff]
  %v107 = vld [vmem:[%s104 + $0x10] sm:$0xff]
  %v108 = vld [vmem:[%s104 + $0x18] sm:$0xff]
  %v109 = vld [vmem:[%s104 + $0x20] sm:$0xff]
  %v110 = vld [vmem:[%s104 + $0x28] sm:$0xff]
  %v111 = vld [vmem:[%s104 + $0x30] sm:$0xff]
  %v112 = vld [vmem:[%s104 + $0x38] sm:$0xff]
  %v113 = vld [vmem:[%s104 + $0x40] sm:$0xff]
  %v114 = vld [vmem:[%s104 + $0x48] sm:$0xff]
  %v115 = vld [vmem:[%s104 + $0x50] sm:$0xff]
  %v116 = vld [vmem:[%s104 + $0x58] sm:$0xff]
  %v117 = vld [vmem:[%s104 + $0x60] sm:$0xff]
  %v118 = vld [vmem:[%s104 + $0x68] sm:$0xff]
  %v119 = vld [vmem:[%s104 + $0x70] sm:$0xff]
  %v120 = vld [vmem:[%s104 + $0x78] sm:$0xff]
  %121 = vmatprep.subr.mxu0 0.0
  %122 = vmatpush1.msra.mxu0 %v120
  %123 = vmatprep.subr.mxu0 0.0
  %124 = vmatpush1.msra.mxu0 %v119
  %125 = vmatprep.subr.mxu0 0.0
  %126 = vmatpush1.msra.mxu0 %v118
  %127 = vmatprep.subr.mxu0 0.0
  %128 = vmatpush1.msra.mxu0 %v117
  %129 = vmatprep.subr.mxu0 0.0
  %130 = vmatpush1.msra.mxu0 %v116
  %131 = vmatprep.subr.mxu0 0.0
  %132 = vmatpush1.msra.mxu0 %v115
  %133 = vmatprep.subr.mxu0 0.0
  %134 = vmatpush1.msra.mxu0 %v114
  %135 = vmatprep.subr.mxu0 0.0
  %136 = vmatpush1.msra.mxu0 %v113
  %137 = vmatprep.subr.mxu0 0.0
  %138 = vmatpush1.msra.mxu0 %v112
  %139 = vmatprep.subr.mxu0 0.0
  %140 = vmatpush1.msra.mxu0 %v111
  %141 = vmatprep.subr.mxu0 0.0
  %142 = vmatpush1.msra.mxu0 %v110
  %143 = vmatprep.subr.mxu0 0.0
  %144 = vmatpush1.msra.mxu0 %v109
  %145 = vmatprep.subr.mxu0 0.0
  %146 = vmatpush1.msra.mxu0 %v108
  %147 = vmatprep.subr.mxu0 0.0
  %148 = vmatpush1.msra.mxu0 %v107
  %149 = vmatprep.subr.mxu0 0.0
  %150 = vmatpush1.msra.mxu0 %v106
  %151 = vmatprep.subr.mxu0 0.0
  %152 = vmatpush1.msra.mxu0 %v105
  %153 = vmatprep.subr.mxu0 0.0
  %154 = vmatpush2.msra.mxu0 0.0
  %155 = vmatprep.subr.mxu0 0.0
  %156 = vmatpush2.msra.mxu0 0.0
  %157 = vmatprep.subr.mxu0 0.0
  %158 = vmatpush2.msra.mxu0 0.0
  %159 = vmatprep.subr.mxu0 0.0
  %160 = vmatpush2.msra.mxu0 0.0
  %161 = vmatprep.subr.mxu0 0.0
  %162 = vmatpush2.msra.mxu0 0.0
  %163 = vmatprep.subr.mxu0 0.0
  %164 = vmatpush2.msra.mxu0 0.0
  %165 = vmatprep.subr.mxu0 0.0
  %166 = vmatpush2.msra.mxu0 0.0
  %167 = vmatprep.subr.mxu0 0.0
  %168 = vmatpush2.msra.mxu0 0.0
  %169 = vmatprep.subr.mxu0 0.0
  %170 = vmatpush2.msra.mxu0 0.0
  %171 = vmatprep.subr.mxu0 0.0
  %172 = vmatpush2.msra.mxu0 0.0
  %173 = vmatprep.subr.mxu0 0.0
  %174 = vmatpush2.msra.mxu0 0.0
  %175 = vmatprep.subr.mxu0 0.0
  %176 = vmatpush2.msra.mxu0 0.0
  %177 = vmatprep.subr.mxu0 0.0
  %178 = vmatpush2.msra.mxu0 0.0
  %179 = vmatprep.subr.mxu0 0.0
  %180 = vmatpush2.msra.mxu0 0.0
  %181 = vmatprep.subr.mxu0 0.0
  %182 = vmatpush2.msra.mxu0 0.0
  %183 = vmatprep.subr.mxu0 0.0
  %184 = vmatpush2.msra.mxu0 0.0
  %185 = vmatprep.mubr.f32.mxu0 0.0
  %186 = vmatmul.mubr.f32.gmra.mxu0 %v12
  %v187 = vpop.f32.mrf.mxu0
  %v188 = vadd.f32 0.0, %v187
  %v189 = vpop.f32.mrf.mxu0
  %190 = vdwg.mxu0
  %v191 = vmax.f32 %v101, %v188
  %v192 = vsub.f32 %v101, %v191
  %v193 = vmul.f32 %v192, 1.442695
  %v194 = vpow.pop %v193
  %v195 = vsub.f32 %v188, %v191
  %v196 = vmul.f32 %v195, 1.442695
  %v197 = vpow.pop %v196
  %v198 = vadd.f32 %v194, %v197
  %s199 = scalar_lea.vmem %s1, 256
  %v200 = vld [vmem:[%s199] sm:$0xff]
  %v201 = vld [vmem:[%s199 + $0x8] sm:$0xff]
  %v202 = vld [vmem:[%s199 + $0x10] sm:$0xff]
  %v203 = vld [vmem:[%s199 + $0x18] sm:$0xff]
  %v204 = vld [vmem:[%s199 + $0x20] sm:$0xff]
  %v205 = vld [vmem:[%s199 + $0x28] sm:$0xff]
  %v206 = vld [vmem:[%s199 + $0x30] sm:$0xff]
  %v207 = vld [vmem:[%s199 + $0x38] sm:$0xff]
  %v208 = vld [vmem:[%s199 + $0x40] sm:$0xff]
  %v209 = vld [vmem:[%s199 + $0x48] sm:$0xff]
  %v210 = vld [vmem:[%s199 + $0x50] sm:$0xff]
  %v211 = vld [vmem:[%s199 + $0x58] sm:$0xff]
  %v212 = vld [vmem:[%s199 + $0x60] sm:$0xff]
  %v213 = vld [vmem:[%s199 + $0x68] sm:$0xff]
  %v214 = vld [vmem:[%s199 + $0x70] sm:$0xff]
  %v215 = vld [vmem:[%s199 + $0x78] sm:$0xff]
  %216 = vmatprep.subr.mxu0 0.0
  %217 = vmatpush1.msra.mxu0 %v215
  %218 = vmatprep.subr.mxu0 0.0
  %219 = vmatpush1.msra.mxu0 %v214
  %220 = vmatprep.subr.mxu0 0.0
  %221 = vmatpush1.msra.mxu0 %v213
  %222 = vmatprep.subr.mxu0 0.0
  %223 = vmatpush1.msra.mxu0 %v212
  %224 = vmatprep.subr.mxu0 0.0
  %225 = vmatpush1.msra.mxu0 %v211
  %226 = vmatprep.subr.mxu0 0.0
  %227 = vmatpush1.msra.mxu0 %v210
  %228 = vmatprep.subr.mxu0 0.0
  %229 = vmatpush1.msra.mxu0 %v209
  %230 = vmatprep.subr.mxu0 0.0
  %231 = vmatpush1.msra.mxu0 %v208
  %232 = vmatprep.subr.mxu0 0.0
  %233 = vmatpush1.msra.mxu0 %v207
  %234 = vmatprep.subr.mxu0 0.0
  %235 = vmatpush1.msra.mxu0 %v206
  %236 = vmatprep.subr.mxu0 0.0
  %237 = vmatpush1.msra.mxu0 %v205
  %238 = vmatprep.subr.mxu0 0.0
  %239 = vmatpush1.msra.mxu0 %v204
  %240 = vmatprep.subr.mxu0 0.0
  %241 = vmatpush1.msra.mxu0 %v203
  %242 = vmatprep.subr.mxu0 0.0
  %243 = vmatpush1.msra.mxu0 %v202
  %244 = vmatprep.subr.mxu0 0.0
  %245 = vmatpush1.msra.mxu0 %v201
  %246 = vmatprep.subr.mxu0 0.0
  %247 = vmatpush1.msra.mxu0 %v200
  %248 = vmatprep.subr.mxu0 0.0
  %249 = vmatpush2.msra.mxu0 0.0
  %250 = vmatprep.subr.mxu0 0.0
  %251 = vmatpush2.msra.mxu0 0.0
  %252 = vmatprep.subr.mxu0 0.0
  %253 = vmatpush2.msra.mxu0 0.0
  %254 = vmatprep.subr.mxu0 0.0
  %255 = vmatpush2.msra.mxu0 0.0
  %256 = vmatprep.subr.mxu0 0.0
  %257 = vmatpush2.msra.mxu0 0.0
  %258 = vmatprep.subr.mxu0 0.0
  %259 = vmatpush2.msra.mxu0 0.0
  %260 = vmatprep.subr.mxu0 0.0
  %261 = vmatpush2.msra.mxu0 0.0
  %262 = vmatprep.subr.mxu0 0.0
  %263 = vmatpush2.msra.mxu0 0.0
  %264 = vmatprep.subr.mxu0 0.0
  %265 = vmatpush2.msra.mxu0 0.0
  %266 = vmatprep.subr.mxu0 0.0
  %267 = vmatpush2.msra.mxu0 0.0
  %268 = vmatprep.subr.mxu0 0.0
  %269 = vmatpush2.msra.mxu0 0.0
  %270 = vmatprep.subr.mxu0 0.0
  %271 = vmatpush2.msra.mxu0 0.0
  %272 = vmatprep.subr.mxu0 0.0
  %273 = vmatpush2.msra.mxu0 0.0
  %274 = vmatprep.subr.mxu0 0.0
  %275 = vmatpush2.msra.mxu0 0.0
  %276 = vmatprep.subr.mxu0 0.0
  %277 = vmatpush2.msra.mxu0 0.0
  %278 = vmatprep.subr.mxu0 0.0
  %279 = vmatpush2.msra.mxu0 0.0
  %280 = vmatprep.mubr.f32.mxu0 0.0
  %281 = vmatmul.mubr.f32.gmra.mxu0 %v13
  %v282 = vpop.f32.mrf.mxu0
  %v283 = vadd.f32 0.0, %v282
  %v284 = vpop.f32.mrf.mxu0
  %285 = vdwg.mxu0
  %v286 = vmax.f32 %v191, %v283
  %v287 = vsub.f32 %v191, %v286
  %v288 = vmul.f32 %v287, 1.442695
  %v289 = vpow.pop %v288
  %v290 = vmul.f32 %v198, %v289
  %v291 = vsub.f32 %v283, %v286
  %v292 = vmul.f32 %v291, 1.442695
  %v293 = vpow.pop %v292
  %v294 = vadd.f32 %v290, %v293
  %s295 = scalar_lea.vmem %s1, 384
  %v296 = vld [vmem:[%s295] sm:$0xff]
  %v297 = vld [vmem:[%s295 + $0x8] sm:$0xff]
  %v298 = vld [vmem:[%s295 + $0x10] sm:$0xff]
  %v299 = vld [vmem:[%s295 + $0x18] sm:$0xff]
  %v300 = vld [vmem:[%s295 + $0x20] sm:$0xff]
  %v301 = vld [vmem:[%s295 + $0x28] sm:$0xff]
  %v302 = vld [vmem:[%s295 + $0x30] sm:$0xff]
  %v303 = vld [vmem:[%s295 + $0x38] sm:$0xff]
  %v304 = vld [vmem:[%s295 + $0x40] sm:$0xff]
  %v305 = vld [vmem:[%s295 + $0x48] sm:$0xff]
  %v306 = vld [vmem:[%s295 + $0x50] sm:$0xff]
  %v307 = vld [vmem:[%s295 + $0x58] sm:$0xff]
  %v308 = vld [vmem:[%s295 + $0x60] sm:$0xff]
  %v309 = vld [vmem:[%s295 + $0x68] sm:$0xff]
  %v310 = vld [vmem:[%s295 + $0x70] sm:$0xff]
  %v311 = vld [vmem:[%s295 + $0x78] sm:$0xff]
  %312 = vmatprep.subr.mxu0 0.0
  %313 = vmatpush1.msra.mxu0 %v311
  %314 = vmatprep.subr.mxu0 0.0
  %315 = vmatpush1.msra.mxu0 %v310
  %316 = vmatprep.subr.mxu0 0.0
  %317 = vmatpush1.msra.mxu0 %v309
  %318 = vmatprep.subr.mxu0 0.0
  %319 = vmatpush1.msra.mxu0 %v308
  %320 = vmatprep.subr.mxu0 0.0
  %321 = vmatpush1.msra.mxu0 %v307
  %322 = vmatprep.subr.mxu0 0.0
  %323 = vmatpush1.msra.mxu0 %v306
  %324 = vmatprep.subr.mxu0 0.0
  %325 = vmatpush1.msra.mxu0 %v305
  %326 = vmatprep.subr.mxu0 0.0
  %327 = vmatpush1.msra.mxu0 %v304
  %328 = vmatprep.subr.mxu0 0.0
  %329 = vmatpush1.msra.mxu0 %v303
  %330 = vmatprep.subr.mxu0 0.0
  %331 = vmatpush1.msra.mxu0 %v302
  %332 = vmatprep.subr.mxu0 0.0
  %333 = vmatpush1.msra.mxu0 %v301
  %334 = vmatprep.subr.mxu0 0.0
  %335 = vmatpush1.msra.mxu0 %v300
  %336 = vmatprep.subr.mxu0 0.0
  %337 = vmatpush1.msra.mxu0 %v299
  %338 = vmatprep.subr.mxu0 0.0
  %339 = vmatpush1.msra.mxu0 %v298
  %340 = vmatprep.subr.mxu0 0.0
  %341 = vmatpush1.msra.mxu0 %v297
  %342 = vmatprep.subr.mxu0 0.0
  %343 = vmatpush1.msra.mxu0 %v296
  %344 = vmatprep.subr.mxu0 0.0
  %345 = vmatpush2.msra.mxu0 0.0
  %346 = vmatprep.subr.mxu0 0.0
  %347 = vmatpush2.msra.mxu0 0.0
  %348 = vmatprep.subr.mxu0 0.0
  %349 = vmatpush2.msra.mxu0 0.0
  %350 = vmatprep.subr.mxu0 0.0
  %351 = vmatpush2.msra.mxu0 0.0
  %352 = vmatprep.subr.mxu0 0.0
  %353 = vmatpush2.msra.mxu0 0.0
  %354 = vmatprep.subr.mxu0 0.0
  %355 = vmatpush2.msra.mxu0 0.0
  %356 = vmatprep.subr.mxu0 0.0
  %357 = vmatpush2.msra.mxu0 0.0
  %358 = vmatprep.subr.mxu0 0.0
  %359 = vmatpush2.msra.mxu0 0.0
  %360 = vmatprep.subr.mxu0 0.0
  %361 = vmatpush2.msra.mxu0 0.0
  %362 = vmatprep.subr.mxu0 0.0
  %363 = vmatpush2.msra.mxu0 0.0
  %364 = vmatprep.subr.mxu0 0.0
  %365 = vmatpush2.msra.mxu0 0.0
  %366 = vmatprep.subr.mxu0 0.0
  %367 = vmatpush2.msra.mxu0 0.0
  %368 = vmatprep.subr.mxu0 0.0
  %369 = vmatpush2.msra.mxu0 0.0
  %370 = vmatprep.subr.mxu0 0.0
  %371 = vmatpush2.msra.mxu0 0.0
  %372 = vmatprep.subr.mxu0 0.0
  %373 = vmatpush2.msra.mxu0 0.0
  %374 = vmatprep.subr.mxu0 0.0
  %375 = vmatpush2.msra.mxu0 0.0
  %376 = vmatprep.mubr.f32.mxu0 0.0
  %377 = vmatmul.mubr.f32.gmra.mxu0 %v14
  %v378 = vpop.f32.mrf.mxu0
  %v379 = vadd.f32 0.0, %v378
  %v380 = vpop.f32.mrf.mxu0
  %381 = vdwg.mxu0
  %v382 = vmax.f32 %v286, %v379
  %v383 = vsub.f32 %v286, %v382
  %v384 = vmul.f32 %v383, 1.442695
  %v385 = vpow.pop %v384
  %v386 = vmul.f32 %v294, %v385
  %v387 = vsub.f32 %v379, %v382
  %v388 = vmul.f32 %v387, 1.442695
  %v389 = vpow.pop %v388
  %v390 = vadd.f32 %v386, %v389
  %s391 = scalar_lea.vmem %s1, 512
  %v392 = vld [vmem:[%s391] sm:$0xff]
  %v393 = vld [vmem:[%s391 + $0x8] sm:$0xff]
  %v394 = vld [vmem:[%s391 + $0x10] sm:$0xff]
  %v395 = vld [vmem:[%s391 + $0x18] sm:$0xff]
  %v396 = vld [vmem:[%s391 + $0x20] sm:$0xff]
  %v397 = vld [vmem:[%s391 + $0x28] sm:$0xff]
  %v398 = vld [vmem:[%s391 + $0x30] sm:$0xff]
  %v399 = vld [vmem:[%s391 + $0x38] sm:$0xff]
  %v400 = vld [vmem:[%s391 + $0x40] sm:$0xff]
  %v401 = vld [vmem:[%s391 + $0x48] sm:$0xff]
  %v402 = vld [vmem:[%s391 + $0x50] sm:$0xff]
  %v403 = vld [vmem:[%s391 + $0x58] sm:$0xff]
  %v404 = vld [vmem:[%s391 + $0x60] sm:$0xff]
  %v405 = vld [vmem:[%s391 + $0x68] sm:$0xff]
  %v406 = vld [vmem:[%s391 + $0x70] sm:$0xff]
  %v407 = vld [vmem:[%s391 + $0x78] sm:$0xff]
  %408 = vmatprep.subr.mxu0 0.0
  %409 = vmatpush1.msra.mxu0 %v407
  %410 = vmatprep.subr.mxu0 0.0
  %411 = vmatpush1.msra.mxu0 %v406
  %412 = vmatprep.subr.mxu0 0.0
  %413 = vmatpush1.msra.mxu0 %v405
  %414 = vmatprep.subr.mxu0 0.0
  %415 = vmatpush1.msra.mxu0 %v404
  %416 = vmatprep.subr.mxu0 0.0
  %417 = vmatpush1.msra.mxu0 %v403
  %418 = vmatprep.subr.mxu0 0.0
  %419 = vmatpush1.msra.mxu0 %v402
  %420 = vmatprep.subr.mxu0 0.0
  %421 = vmatpush1.msra.mxu0 %v401
  %422 = vmatprep.subr.mxu0 0.0
  %423 = vmatpush1.msra.mxu0 %v400
  %424 = vmatprep.subr.mxu0 0.0
  %425 = vmatpush1.msra.mxu0 %v399
  %426 = vmatprep.subr.mxu0 0.0
  %427 = vmatpush1.msra.mxu0 %v398
  %428 = vmatprep.subr.mxu0 0.0
  %429 = vmatpush1.msra.mxu0 %v397
  %430 = vmatprep.subr.mxu0 0.0
  %431 = vmatpush1.msra.mxu0 %v396
  %432 = vmatprep.subr.mxu0 0.0
  %433 = vmatpush1.msra.mxu0 %v395
  %434 = vmatprep.subr.mxu0 0.0
  %435 = vmatpush1.msra.mxu0 %v394
  %436 = vmatprep.subr.mxu0 0.0
  %437 = vmatpush1.msra.mxu0 %v393
  %438 = vmatprep.subr.mxu0 0.0
  %439 = vmatpush1.msra.mxu0 %v392
  %440 = vmatprep.subr.mxu0 0.0
  %441 = vmatpush2.msra.mxu0 0.0
  %442 = vmatprep.subr.mxu0 0.0
  %443 = vmatpush2.msra.mxu0 0.0
  %444 = vmatprep.subr.mxu0 0.0
  %445 = vmatpush2.msra.mxu0 0.0
  %446 = vmatprep.subr.mxu0 0.0
  %447 = vmatpush2.msra.mxu0 0.0
  %448 = vmatprep.subr.mxu0 0.0
  %449 = vmatpush2.msra.mxu0 0.0
  %450 = vmatprep.subr.mxu0 0.0
  %451 = vmatpush2.msra.mxu0 0.0
  %452 = vmatprep.subr.mxu0 0.0
  %453 = vmatpush2.msra.mxu0 0.0
  %454 = vmatprep.subr.mxu0 0.0
  %455 = vmatpush2.msra.mxu0 0.0
  %456 = vmatprep.subr.mxu0 0.0
  %457 = vmatpush2.msra.mxu0 0.0
  %458 = vmatprep.subr.mxu0 0.0
  %459 = vmatpush2.msra.mxu0 0.0
  %460 = vmatprep.subr.mxu0 0.0
  %461 = vmatpush2.msra.mxu0 0.0
  %462 = vmatprep.subr.mxu0 0.0
  %463 = vmatpush2.msra.mxu0 0.0
  %464 = vmatprep.subr.mxu0 0.0
  %465 = vmatpush2.msra.mxu0 0.0
  %466 = vmatprep.subr.mxu0 0.0
  %467 = vmatpush2.msra.mxu0 0.0
  %468 = vmatprep.subr.mxu0 0.0
  %469 = vmatpush2.msra.mxu0 0.0
  %470 = vmatprep.subr.mxu0 0.0
  %471 = vmatpush2.msra.mxu0 0.0
  %472 = vmatprep.mubr.f32.mxu0 0.0
  %473 = vmatmul.mubr.f32.gmra.mxu0 %v15
  %v474 = vpop.f32.mrf.mxu0
  %v475 = vadd.f32 0.0, %v474
  %v476 = vpop.f32.mrf.mxu0
  %477 = vdwg.mxu0
  %v478 = vmax.f32 %v382, %v475
  %v479 = vsub.f32 %v382, %v478
  %v480 = vmul.f32 %v479, 1.442695
  %v481 = vpow.pop %v480
  %v482 = vmul.f32 %v390, %v481
  %v483 = vsub.f32 %v475, %v478
  %v484 = vmul.f32 %v483, 1.442695
  %v485 = vpow.pop %v484
  %v486 = vadd.f32 %v482, %v485
  %s487 = scalar_lea.vmem %s1, 640
  %v488 = vld [vmem:[%s487] sm:$0xff]
  %v489 = vld [vmem:[%s487 + $0x8] sm:$0xff]
  %v490 = vld [vmem:[%s487 + $0x10] sm:$0xff]
  %v491 = vld [vmem:[%s487 + $0x18] sm:$0xff]
  %v492 = vld [vmem:[%s487 + $0x20] sm:$0xff]
  %v493 = vld [vmem:[%s487 + $0x28] sm:$0xff]
  %v494 = vld [vmem:[%s487 + $0x30] sm:$0xff]
  %v495 = vld [vmem:[%s487 + $0x38] sm:$0xff]
  %v496 = vld [vmem:[%s487 + $0x40] sm:$0xff]
  %v497 = vld [vmem:[%s487 + $0x48] sm:$0xff]
  %v498 = vld [vmem:[%s487 + $0x50] sm:$0xff]
  %v499 = vld [vmem:[%s487 + $0x58] sm:$0xff]
  %v500 = vld [vmem:[%s487 + $0x60] sm:$0xff]
  %v501 = vld [vmem:[%s487 + $0x68] sm:$0xff]
  %v502 = vld [vmem:[%s487 + $0x70] sm:$0xff]
  %v503 = vld [vmem:[%s487 + $0x78] sm:$0xff]
  %504 = vmatprep.subr.mxu0 0.0
  %505 = vmatpush1.msra.mxu0 %v503
  %506 = vmatprep.subr.mxu0 0.0
  %507 = vmatpush1.msra.mxu0 %v502
  %508 = vmatprep.subr.mxu0 0.0
  %509 = vmatpush1.msra.mxu0 %v501
  %510 = vmatprep.subr.mxu0 0.0
  %511 = vmatpush1.msra.mxu0 %v500
  %512 = vmatprep.subr.mxu0 0.0
  %513 = vmatpush1.msra.mxu0 %v499
  %514 = vmatprep.subr.mxu0 0.0
  %515 = vmatpush1.msra.mxu0 %v498
  %516 = vmatprep.subr.mxu0 0.0
  %517 = vmatpush1.msra.mxu0 %v497
  %518 = vmatprep.subr.mxu0 0.0
  %519 = vmatpush1.msra.mxu0 %v496
  %520 = vmatprep.subr.mxu0 0.0
  %521 = vmatpush1.msra.mxu0 %v495
  %522 = vmatprep.subr.mxu0 0.0
  %523 = vmatpush1.msra.mxu0 %v494
  %524 = vmatprep.subr.mxu0 0.0
  %525 = vmatpush1.msra.mxu0 %v493
  %526 = vmatprep.subr.mxu0 0.0
  %527 = vmatpush1.msra.mxu0 %v492
  %528 = vmatprep.subr.mxu0 0.0
  %529 = vmatpush1.msra.mxu0 %v491
  %530 = vmatprep.subr.mxu0 0.0
  %531 = vmatpush1.msra.mxu0 %v490
  %532 = vmatprep.subr.mxu0 0.0
  %533 = vmatpush1.msra.mxu0 %v489
  %534 = vmatprep.subr.mxu0 0.0
  %535 = vmatpush1.msra.mxu0 %v488
  %536 = vmatprep.subr.mxu0 0.0
  %537 = vmatpush2.msra.mxu0 0.0
  %538 = vmatprep.subr.mxu0 0.0
  %539 = vmatpush2.msra.mxu0 0.0
  %540 = vmatprep.subr.mxu0 0.0
  %541 = vmatpush2.msra.mxu0 0.0
  %542 = vmatprep.subr.mxu0 0.0
  %543 = vmatpush2.msra.mxu0 0.0
  %544 = vmatprep.subr.mxu0 0.0
  %545 = vmatpush2.msra.mxu0 0.0
  %546 = vmatprep.subr.mxu0 0.0
  %547 = vmatpush2.msra.mxu0 0.0
  %548 = vmatprep.subr.mxu0 0.0
  %549 = vmatpush2.msra.mxu0 0.0
  %550 = vmatprep.subr.mxu0 0.0
  %551 = vmatpush2.msra.mxu0 0.0
  %552 = vmatprep.subr.mxu0 0.0
  %553 = vmatpush2.msra.mxu0 0.0
  %554 = vmatprep.subr.mxu0 0.0
  %555 = vmatpush2.msra.mxu0 0.0
  %556 = vmatprep.subr.mxu0 0.0
  %557 = vmatpush2.msra.mxu0 0.0
  %558 = vmatprep.subr.mxu0 0.0
  %559 = vmatpush2.msra.mxu0 0.0
  %560 = vmatprep.subr.mxu0 0.0
  %561 = vmatpush2.msra.mxu0 0.0
  %562 = vmatprep.subr.mxu0 0.0
  %563 = vmatpush2.msra.mxu0 0.0
  %564 = vmatprep.subr.mxu0 0.0
  %565 = vmatpush2.msra.mxu0 0.0
  %566 = vmatprep.subr.mxu0 0.0
  %567 = vmatpush2.msra.mxu0 0.0
  %568 = vmatprep.mubr.f32.mxu0 0.0
  %569 = vmatmul.mubr.f32.gmra.mxu0 %v16
  %v570 = vpop.f32.mrf.mxu0
  %v571 = vadd.f32 0.0, %v570
  %v572 = vpop.f32.mrf.mxu0
  %573 = vdwg.mxu0
  %v574 = vmax.f32 %v478, %v571
  %v575 = vsub.f32 %v478, %v574
  %v576 = vmul.f32 %v575, 1.442695
  %v577 = vpow.pop %v576
  %v578 = vmul.f32 %v486, %v577
  %v579 = vsub.f32 %v571, %v574
  %v580 = vmul.f32 %v579, 1.442695
  %v581 = vpow.pop %v580
  %v582 = vadd.f32 %v578, %v581
  %s583 = scalar_lea.vmem %s1, 768
  %v584 = vld [vmem:[%s583] sm:$0xff]
  %v585 = vld [vmem:[%s583 + $0x8] sm:$0xff]
  %v586 = vld [vmem:[%s583 + $0x10] sm:$0xff]
  %v587 = vld [vmem:[%s583 + $0x18] sm:$0xff]
  %v588 = vld [vmem:[%s583 + $0x20] sm:$0xff]
  %v589 = vld [vmem:[%s583 + $0x28] sm:$0xff]
  %v590 = vld [vmem:[%s583 + $0x30] sm:$0xff]
  %v591 = vld [vmem:[%s583 + $0x38] sm:$0xff]
  %v592 = vld [vmem:[%s583 + $0x40] sm:$0xff]
  %v593 = vld [vmem:[%s583 + $0x48] sm:$0xff]
  %v594 = vld [vmem:[%s583 + $0x50] sm:$0xff]
  %v595 = vld [vmem:[%s583 + $0x58] sm:$0xff]
  %v596 = vld [vmem:[%s583 + $0x60] sm:$0xff]
  %v597 = vld [vmem:[%s583 + $0x68] sm:$0xff]
  %v598 = vld [vmem:[%s583 + $0x70] sm:$0xff]
  %v599 = vld [vmem:[%s583 + $0x78] sm:$0xff]
  %600 = vmatprep.subr.mxu0 0.0
  %601 = vmatpush1.msra.mxu0 %v599
  %602 = vmatprep.subr.mxu0 0.0
  %603 = vmatpush1.msra.mxu0 %v598
  %604 = vmatprep.subr.mxu0 0.0
  %605 = vmatpush1.msra.mxu0 %v597
  %606 = vmatprep.subr.mxu0 0.0
  %607 = vmatpush1.msra.mxu0 %v596
  %608 = vmatprep.subr.mxu0 0.0
  %609 = vmatpush1.msra.mxu0 %v595
  %610 = vmatprep.subr.mxu0 0.0
  %611 = vmatpush1.msra.mxu0 %v594
  %612 = vmatprep.subr.mxu0 0.0
  %613 = vmatpush1.msra.mxu0 %v593
  %614 = vmatprep.subr.mxu0 0.0
  %615 = vmatpush1.msra.mxu0 %v592
  %616 = vmatprep.subr.mxu0 0.0
  %617 = vmatpush1.msra.mxu0 %v591
  %618 = vmatprep.subr.mxu0 0.0
  %619 = vmatpush1.msra.mxu0 %v590
  %620 = vmatprep.subr.mxu0 0.0
  %621 = vmatpush1.msra.mxu0 %v589
  %622 = vmatprep.subr.mxu0 0.0
  %623 = vmatpush1.msra.mxu0 %v588
  %624 = vmatprep.subr.mxu0 0.0
  %625 = vmatpush1.msra.mxu0 %v587
  %626 = vmatprep.subr.mxu0 0.0
  %627 = vmatpush1.msra.mxu0 %v586
  %628 = vmatprep.subr.mxu0 0.0
  %629 = vmatpush1.msra.mxu0 %v585
  %630 = vmatprep.subr.mxu0 0.0
  %631 = vmatpush1.msra.mxu0 %v584
  %632 = vmatprep.subr.mxu0 0.0
  %633 = vmatpush2.msra.mxu0 0.0
  %634 = vmatprep.subr.mxu0 0.0
  %635 = vmatpush2.msra.mxu0 0.0
  %636 = vmatprep.subr.mxu0 0.0
  %637 = vmatpush2.msra.mxu0 0.0
  %638 = vmatprep.subr.mxu0 0.0
  %639 = vmatpush2.msra.mxu0 0.0
  %640 = vmatprep.subr.mxu0 0.0
  %641 = vmatpush2.msra.mxu0 0.0
  %642 = vmatprep.subr.mxu0 0.0
  %643 = vmatpush2.msra.mxu0 0.0
  %644 = vmatprep.subr.mxu0 0.0
  %645 = vmatpush2.msra.mxu0 0.0
  %646 = vmatprep.subr.mxu0 0.0
  %647 = vmatpush2.msra.mxu0 0.0
  %648 = vmatprep.subr.mxu0 0.0
  %649 = vmatpush2.msra.mxu0 0.0
  %650 = vmatprep.subr.mxu0 0.0
  %651 = vmatpush2.msra.mxu0 0.0
  %652 = vmatprep.subr.mxu0 0.0
  %653 = vmatpush2.msra.mxu0 0.0
  %654 = vmatprep.subr.mxu0 0.0
  %655 = vmatpush2.msra.mxu0 0.0
  %656 = vmatprep.subr.mxu0 0.0
  %657 = vmatpush2.msra.mxu0 0.0
  %658 = vmatprep.subr.mxu0 0.0
  %659 = vmatpush2.msra.mxu0 0.0
  %660 = vmatprep.subr.mxu0 0.0
  %661 = vmatpush2.msra.mxu0 0.0
  %662 = vmatprep.subr.mxu0 0.0
  %663 = vmatpush2.msra.mxu0 0.0
  %664 = vmatprep.mubr.f32.mxu0 0.0
  %665 = vmatmul.mubr.f32.gmra.mxu0 %v17
  %v666 = vpop.f32.mrf.mxu0
  %v667 = vadd.f32 0.0, %v666
  %v668 = vpop.f32.mrf.mxu0
  %669 = vdwg.mxu0
  %v670 = vmax.f32 %v574, %v667
  %v671 = vsub.f32 %v574, %v670
  %v672 = vmul.f32 %v671, 1.442695
  %v673 = vpow.pop %v672
  %v674 = vmul.f32 %v582, %v673
  %v675 = vsub.f32 %v667, %v670
  %v676 = vmul.f32 %v675, 1.442695
  %v677 = vpow.pop %v676
  %v678 = vadd.f32 %v674, %v677
  %v679 = vlog2.pop %v678
  %v680 = vmul.f32 %v679, 0.6931472
  %v681 = vadd.f32 %v670, %v680
  %682 = vst [vmem:[%s2] sm:$0xff] %v681
  // Predicated region
  $region10: #{lora_moe_forward.1} parent=0 // pred_check
    _
  $region11: #{lora_moe_forward.1} parent=0 // pred_check_branch
    %684 = sbr.rel (0) target = $region13
  $region12: #{lora_moe_forward.1} parent=0 // pred_region
    _
  $region13: #{lora_moe_forward.1} parent=0 // pred_fallthru
    _
  // Predicated region
  $region14: #{lora_moe_forward.1} parent=0 // pred_check
    _
  $region15: #{lora_moe_forward.1} parent=0 // pred_check_branch
    %686 = sbr.rel (0) target = $region17
  $region16: #{lora_moe_forward.1} parent=0 // pred_region
    _
  $region17: #{lora_moe_forward.1} parent=0 // pred_fallthru
    _

</llo_original>
